<compile_context>
chip_gen: v5e
topology: v5e:2x2
jax: 0.10.0
libtpu: 0.0.40
codegen_flags: <defaults>
</compile_context>

<pallas_src>
import functools

import jax
import jax.numpy as jnp
from jax import lax
from jax.experimental import pallas as pl
from jax.experimental.pallas import tpu as pltpu


# --------------------------------------------------------------------------
# Host-side constant arrays (tiny)
# --------------------------------------------------------------------------
def _octant_index(S):
    """(1, V) array giving each voxel's AdaptiveAvgPool3d(2) octant id (0..7)."""
    half = S // 2
    bit = (jnp.arange(S) >= half).astype(jnp.float32)
    idx = bit[:, None, None] * 4 + bit[None, :, None] * 2 + bit[None, None, :]
    return idx.reshape(1, S ** 3)


def _interp_matrix(S):
    """(8, V) trilinear-upsample matrix 2^3 -> S^3 (align_corners=False),
    matching nn.Upsample(S, mode='trilinear')."""
    scale = 2.0 / S
    src = (jnp.arange(S, dtype=jnp.float32) + 0.5) * scale - 0.5
    src = jnp.maximum(src, 0.0)
    i0 = jnp.clip(jnp.floor(src).astype(jnp.int32), 0, 1)
    i1 = jnp.minimum(i0 + 1, 1)
    lam = src - i0.astype(jnp.float32)
    A = jnp.zeros((S, 2), jnp.float32)
    A = A.at[jnp.arange(S), i0].add(1.0 - lam)
    A = A.at[jnp.arange(S), i1].add(lam)
    return jnp.einsum('da,hb,wc->abcdhw', A, A, A).reshape(8, S ** 3)


# --------------------------------------------------------------------------
# Pass 1: exact f32 AdaptiveAvgPool3d(2) octant sums.
# Grid (n_split, n_j): leading axis is a parallel split of the V reduction
# (megacore-friendly even at N=1); inner axis is the V-tile reduction.
# All N*C rows are pooled per tile (dense sublanes, N× fewer steps).
# --------------------------------------------------------------------------
def _pool_kernel(x_ref, oct_ref, part_ref, acc_ref):
    j = pl.program_id(1)

    @pl.when(j == 0)
    def _():
        acc_ref[...] = jnp.zeros_like(acc_ref)

    xs = x_ref[...]                                  # (NC, vt) f32 — exact
    oc = oct_ref[...].astype(jnp.float32)            # (1, vt) octant ids 0..7
    # 8 masked lane-reductions (VPU mul + XLU reduce); replaces the streamed
    # one-hot matrix (was 16 B/voxel of HBM traffic) with 2 B/voxel.
    for o in range(8):
        m = (oc == float(o)).astype(jnp.float32)     # (1, vt)
        acc_ref[:, o:o + 1] += jnp.sum(xs * m, axis=1, keepdims=True)

    @pl.when(j == pl.num_programs(1) - 1)
    def _():
        part_ref[0] = acc_ref[...]


# --------------------------------------------------------------------------
# Pass 2 (dominant work, fully parallel (n_vt, N) grid): trilinear upsample +
# BN2 shift + ReLU + output 1x1x1 conv. The lane tile is processed in an
# inner fori_loop over sub-chunks so the (B*C, ·) intermediates stay small.
# --------------------------------------------------------------------------
def _upsample_out_kernel(x_ref, y_ref, m_ref, t2_ref, wo0_ref, wo1_ref,
                         bo_ref, o_ref, *, chunk, n_chunks):
    yb = y_ref[0]                      # (BC, 8) bf16 branch features (s2 folded in)
    t2 = t2_ref[...]                   # (BC, 1) f32 BN2 shift
    wo0 = wo0_ref[...]                 # (C, C)  bf16 — original-channel weights
    wo1 = wo1_ref[...]                 # (C, BC) bf16 — branch-channel weights
    bo = bo_ref[...]                   # (C, 1)  f32

    def body(i, carry):
        start = pl.multiple_of(i * chunk, chunk)
        mt = m_ref[:, pl.ds(start, chunk)]                           # (8, chunk) bf16
        up = jnp.dot(yb, mt, preferred_element_type=jnp.float32) + t2
        up = jnp.maximum(up, 0.0)                                    # (BC, chunk) f32
        xt = x_ref[0, :, pl.ds(start, chunk)].astype(wo0.dtype)      # cast in-kernel
        acc = jnp.dot(wo0, xt, preferred_element_type=jnp.float32)
        acc += jnp.dot(wo1, up.astype(wo1.dtype),
                       preferred_element_type=jnp.float32)
        o_ref[0, :, pl.ds(start, chunk)] = (acc + bo).astype(o_ref.dtype)
        return carry

    lax.fori_loop(0, n_chunks, body, 0, unroll=n_chunks <= 4)


# --------------------------------------------------------------------------
# Generation-aware tile / chunk planning
# --------------------------------------------------------------------------
def _vmem_capacity_bytes():
    try:
        return int(pltpu.get_tpu_info().vmem_capacity_bytes)
    except Exception:
        return 64 << 20          # conservative (v7x-class) default


def _plan_tiles(V, N, C, BC):
    NC = N * C
    cap = _vmem_capacity_bytes()
    if cap <= (64 << 20):        # v7x-class: 64 MiB VMEM / core
        block_budget, vmem_limit = 20 << 20, 42 << 20
    else:                        # v5e / v6e: 128 MiB VMEM
        block_budget, vmem_limit = 48 << 20, 96 << 20

    # Inner pass-2 lane chunk: caps live (BC, chunk) upsample intermediates.
    chunk = 1024
    while chunk > 128 and (6 * BC + 8 * C) * chunk > (4 << 20):
        chunk //= 2

    # Per-voxel VMEM of double-buffered streamed blocks, with sublane padding
    # of narrow blocks (f32 pads to 8 rows, bf16 to 16 rows).
    p1 = 2 * 4 * max(NC, 8) + 2 * 2 * 16              # pass 1: x f32 + oct bf16
    p2 = 2 * 2 * 4 * max(C, 8) + 2 * 2 * 16           # pass 2: x + out f32, M bf16
    per_voxel = max(p1, p2)
    const_bytes = 2 * 2 * (C * C + C * BC) + (6 * BC + 8 * C) * chunk + (2 << 20)

    if V % 128 != 0:
        vt = V                                        # small/odd fallback: one tile
    else:
        vt = V
        while vt * per_voxel + const_bytes > block_budget and vt % 256 == 0:
            vt //= 2
        # Keep >=4 spatial tiles when possible: pipelining + a 2-way parallel
        # split of the pass-1 reduction keeps both v7x TensorCores busy at N=1.
        while V // vt < 4 and vt % 256 == 0:
            vt //= 2

    n_vt = V // vt
    chunk = min(chunk, vt)
    while chunk > 128 and vt % chunk != 0:
        chunk //= 2
    if vt % chunk != 0:
        chunk = vt
    n_chunks = vt // chunk
    n_split = 2 if n_vt % 2 == 0 else 1
    return vt, n_vt, chunk, n_chunks, n_split, vmem_limit


# --------------------------------------------------------------------------
# Wrapper
# --------------------------------------------------------------------------
def ppm_forward(x, params, *, matmul_dtype=jnp.bfloat16, out_dtype=jnp.float32):
    """x: (N, C, S, S, S) float32 (PyTorch NCDHW).
    params = (W1, b1, s1, t1, s2, t2, Wout, bout); s*/t* are eval-mode
    BatchNorm3d running stats folded into per-channel scale/shift.
    Set out_dtype=jnp.bfloat16 to halve the dominant output write traffic."""
    W1, b1, s1, t1, s2, t2, Wout, bout = params
    N, C, S = x.shape[0], x.shape[1], x.shape[2]
    assert S % 2 == 0, "AdaptiveAvgPool3d(2) path requires an even spatial size"
    V = S ** 3
    B = W1.shape[0]
    BC = B * C
    NC = N * C
    vt, n_vt, chunk, n_chunks, n_split, vmem_limit = _plan_tiles(V, N, C, BC)
    n_j = n_vt // n_split

    # ---- host-side folding (eval-mode BN): BN1 + 1/(S/2)^3 into conv1 ------
    inv_pool = 1.0 / float((S // 2) ** 3)
    W1s = (s1[:, :, None] * W1 * inv_pool).reshape(BC, C).astype(jnp.float32)
    b1s = (s1 * b1 + t1).reshape(BC, 1).astype(jnp.float32)
    s2s = s2.reshape(BC, 1).astype(jnp.float32)
    t2s = t2.reshape(BC, 1).astype(jnp.float32)
    Wo0 = Wout[:, :C].astype(matmul_dtype)            # original-channel block
    Wo1 = Wout[:, C:].astype(matmul_dtype)            # all branch-channel blocks
    boutr = bout.reshape(C, 1).astype(jnp.float32)

    # Free views of x (no dtype conversion / no extra HBM pass).
    x_flat = x.reshape(NC, V)
    x3 = x.reshape(N, C, V)
    oct_idx = _octant_index(S).astype(jnp.bfloat16)   # (1, V) — 2 B/voxel stream
    M = _interp_matrix(S).astype(matmul_dtype)        # (8, V)

    # TODO(synk): once pipeline_mode=pl.Buffered(1) single-buffering of the
    # constant operands (Wo0/Wo1/t2s/boutr) and Buffered(3) on the big streams
    # is robust across generations, enable it to reclaim VMEM at large C.

    # ---- pass 1: exact f32 octant sums, split V-reduction -------------------
    part = pl.pallas_call(
        _pool_kernel,
        out_shape=jax.ShapeDtypeStruct((n_split, NC, 8), jnp.float32),
        grid_spec=pltpu.PrefetchScalarGridSpec(
            num_scalar_prefetch=0,
            grid=(n_split, n_j),
            in_specs=[
                pl.BlockSpec((NC, vt), lambda s, j: (0, s * n_j + j)),   # x (f32)
                pl.BlockSpec((1, vt), lambda s, j: (0, s * n_j + j)),    # octant ids
            ],
            out_specs=pl.BlockSpec((1, NC, 8), lambda s, j: (s, 0, 0)),
            scratch_shapes=[pltpu.VMEM((NC, 8), jnp.float32)],
        ),
        compiler_params=pltpu.CompilerParams(
            dimension_semantics=("parallel", "arbitrary"),
            vmem_limit_bytes=vmem_limit),
    )(x_flat, oct_idx)

    # ---- tiny host epilogue: combine halves + branch conv + BN1 + ReLU + s2 -
    hp = jax.lax.Precision.HIGHEST
    pooled = part.sum(axis=0).reshape(N, C, 8)                     # exact f32 sums
    y = jnp.einsum('bc,nck->nbk', W1s, pooled, precision=hp) + b1s[None]
    y_all = (jnp.maximum(y, 0.0) * s2s[None]).astype(matmul_dtype)  # (N, BC, 8) bf16

    # ---- pass 2: upsample + BN2 shift + ReLU + output conv -------------------
    kernel2 = functools.partial(_upsample_out_kernel, chunk=chunk, n_chunks=n_chunks)
    out = pl.pallas_call(
        kernel2,
        out_shape=jax.ShapeDtypeStruct((N, C, V), out_dtype),
        grid_spec=pltpu.PrefetchScalarGridSpec(
            num_scalar_prefetch=0,
            # Spatial tile outer, batch inner: the M block index is constant
            # across the inner batch steps, so its re-DMA is skipped.
            grid=(n_vt, N),
            in_specs=[
                pl.BlockSpec((1, C, vt), lambda j, n: (n, 0, j)),   # x tile (f32)
                pl.BlockSpec((1, BC, 8), lambda j, n: (n, 0, 0)),   # branch features
                pl.BlockSpec((8, vt), lambda j, n: (0, j)),         # interp matrix tile
                pl.BlockSpec((BC, 1), lambda j, n: (0, 0)),         # BN2 shift
                pl.BlockSpec((C, C), lambda j, n: (0, 0)),          # Wout, original chans
                pl.BlockSpec((C, BC), lambda j, n: (0, 0)),         # Wout, branch chans
                pl.BlockSpec((C, 1), lambda j, n: (0, 0)),          # output conv bias
            ],
            out_specs=pl.BlockSpec((1, C, vt), lambda j, n: (n, 0, j)),
        ),
        compiler_params=pltpu.CompilerParams(
            dimension_semantics=("parallel", "parallel"),
            vmem_limit_bytes=vmem_limit),
    )(x3, y_all, M, t2s, Wo0, Wo1, boutr)
    return out.reshape(N, C, S, S, S)


# --------------------------------------------------------------------------
# Pure-JAX f32 reference (PyTorch semantics) for validation
# --------------------------------------------------------------------------
def ppm_reference(x, params):
    W1, b1, s1, t1, s2, t2, Wout, bout = params
    N, C, S = x.shape[0], x.shape[1], x.shape[2]
    B = W1.shape[0]
    half = S // 2
    hp = jax.lax.Precision.HIGHEST
    pooled = x.reshape(N, C, 2, half, 2, half, 2, half).mean(axis=(3, 5, 7)).reshape(N, C, 8)
    M = _interp_matrix(S)
    feats = [x.reshape(N, C, S ** 3)]
    for b in range(B):
        y = jnp.einsum('oc,nck->nok', W1[b], pooled, precision=hp) + b1[b][None, :, None]
        y = jnp.maximum(y * s1[b][None, :, None] + t1[b][None, :, None], 0.0)
        up = jnp.einsum('nck,kv->ncv', y, M, precision=hp)
        up = jnp.maximum(up * s2[b][None, :, None] + t2[b][None, :, None], 0.0)
        feats.append(up)
    cat = jnp.concatenate(feats, axis=1)
    out = jnp.einsum('oc,ncv->nov', Wout, cat, precision=hp) + bout[None, :, None]
    return out.reshape(N, C, S, S, S)


if __name__ == "__main__":
    N, C, S = 2, 4, 8          # batch, inChan, cubic spatial size
    B = 4                      # len(sizes): every branch adaptive-pools to 2^3
    eps = 1e-5

    key = jax.random.PRNGKey(0)
    ks = jax.random.split(key, 16)
    x = jax.random.normal(ks[0], (N, C, S, S, S), jnp.float32)

    # Deterministic synthetic parameters (shapes follow the PyTorch __init__).
    W1 = 0.3 * jax.random.normal(ks[1], (B, C, C), jnp.float32)        # Conv3d k=1
    b1 = 0.1 * jax.random.normal(ks[2], (B, C), jnp.float32)
    g1 = 1.0 + 0.1 * jax.random.normal(ks[3], (B, C), jnp.float32)     # BN1 gamma
    be1 = 0.1 * jax.random.normal(ks[4], (B, C), jnp.float32)          # BN1 beta
    rm1 = 0.1 * jax.random.normal(ks[5], (B, C), jnp.float32)          # BN1 running mean
    rv1 = 0.9 + 0.2 * jax.random.uniform(ks[6], (B, C), jnp.float32)   # BN1 running var
    g2 = 1.0 + 0.1 * jax.random.normal(ks[7], (B, C), jnp.float32)     # BN2
    be2 = 0.1 * jax.random.normal(ks[8], (B, C), jnp.float32)
    rm2 = 0.1 * jax.random.normal(ks[9], (B, C), jnp.float32)
    rv2 = 0.9 + 0.2 * jax.random.uniform(ks[10], (B, C), jnp.float32)
    Wout = 0.3 * jax.random.normal(ks[11], (C, C * (B + 1)), jnp.float32)  # outputTrans
    bout = 0.1 * jax.random.normal(ks[12], (C,), jnp.float32)

    # Eval-mode BatchNorm3d: running stats folded into per-channel scale/shift.
    # TODO(synk): training-mode BatchNorm (batch statistics) would need an
    # extra cross-batch reduction pass; not implemented here.
    s1 = g1 / jnp.sqrt(rv1 + eps)
    t1 = be1 - rm1 * s1
    s2 = g2 / jnp.sqrt(rv2 + eps)
    t2 = be2 - rm2 * s2

    params = (W1, b1, s1, t1, s2, t2, Wout, bout)

    out = jax.block_until_ready(ppm_forward(x, params))
    ref = jax.block_until_ready(ppm_reference(x, params))
    assert out.shape == (N, C, S, S, S)
    # bf16 MXU operands with f32 accumulation -> tolerance sized for bf16.
    if not jnp.allclose(out, ref, rtol=3e-2, atol=3e-2):
        max_err = float(jnp.max(jnp.abs(out - ref)))
        raise AssertionError(f"Pallas PPM output does not match reference (max abs err {max_err})")
    print("KERNEL_OK")
</pallas_src>

<mosaic_0001>
module attributes {stable_mosaic.version = 11 : i64} {
  func.func @_pool_kernel(%arg0: i32, %arg1: i32, %arg2: memref<8x128xf32, #tpu.memory_space<vmem>>, %arg3: memref<1x128xbf16, #tpu.memory_space<vmem>>, %arg4: memref<1x8x8xf32, #tpu.memory_space<vmem>>, %arg5: memref<8x8xf32, #tpu.memory_space<vmem>>) attributes {dimension_semantics = [#tpu.dimension_semantics<parallel>, #tpu.dimension_semantics<arbitrary>], iteration_bounds = array<i64: 2, 2>, scalar_prefetch = 0 : i64, scratch_operands = 1 : i64, tpu.core_type = #tpu.core_type<tc>, window_params = [{transform_indices = @transform_0, window_bounds = array<i64: 8, 128>}, {transform_indices = @transform_1, window_bounds = array<i64: 1, 128>}, {transform_indices = @transform_2, window_bounds = array<i64: 1, 8, 8>}]} {
    %c0_i32 = arith.constant 0 : i32
    %0 = arith.cmpi eq, %arg1, %c0_i32 : i32
    %1 = arith.extui %0 : i1 to i32
    %c0_i32_0 = arith.constant 0 : i32
    %2 = arith.cmpi ne, %1, %c0_i32_0 : i32
    scf.if %2 {
      %cst_45 = arith.constant 0.000000e+00 : f32
      %97 = vector.broadcast %cst_45 : f32 to vector<8x8xf32>
      %c0_46 = arith.constant 0 : index
      %c0_47 = arith.constant 0 : index
      %98 = vector.load %arg5[%c0_46, %c0_47] : memref<8x8xf32, #tpu.memory_space<vmem>>, vector<8x8xf32>
      tpu.vector_store %arg5[%c0_46, %c0_47], %97 {strides = array<i32>} : memref<8x8xf32, #tpu.memory_space<vmem>>, vector<8x8xf32>,
    } else {
    }
    %c0 = arith.constant 0 : index
    %c0_1 = arith.constant 0 : index
    %3 = vector.load %arg2[%c0, %c0_1] : memref<8x128xf32, #tpu.memory_space<vmem>>, vector<8x128xf32>
    %c0_2 = arith.constant 0 : index
    %c0_3 = arith.constant 0 : index
    %4 = vector.load %arg3[%c0_2, %c0_3] : memref<1x128xbf16, #tpu.memory_space<vmem>>, vector<1x128xbf16>
    %5 = arith.extf %4 : vector<1x128xbf16> to vector<1x128xf32>
    %cst = arith.constant 0.000000e+00 : f32
    %6 = vector.broadcast %cst : f32 to vector<1x128xf32>
    %7 = arith.cmpf oeq, %5, %6 : vector<1x128xf32>
    %8 = arith.extui %7 : vector<1x128xi1> to vector<1x128xi32>
    %9 = arith.sitofp %8 : vector<1x128xi32> to vector<1x128xf32>
    %c0_4 = arith.constant 0 : index
    %c0_5 = arith.constant 0 : index
    %10 = vector.load %arg5[%c0_4, %c0_5] : memref<8x8xf32, #tpu.memory_space<vmem>>, vector<8x1xf32>
    %11 = vector.broadcast %9 : vector<1x128xf32> to vector<8x128xf32>
    %12 = arith.mulf %3, %11 : vector<8x128xf32>
    %cst_6 = arith.constant dense<0.000000e+00> : vector<8xf32>
    %13 = vector.multi_reduction <add>, %12, %cst_6 [1] : vector<8x128xf32> to vector<8xf32>
    %14 = vector.shape_cast %13 : vector<8xf32> to vector<8x1xf32>
    %15 = arith.addf %10, %14 : vector<8x1xf32>
    %c0_7 = arith.constant 0 : index
    %c0_8 = arith.constant 0 : index
    %16 = vector.load %arg5[%c0_7, %c0_8] : memref<8x8xf32, #tpu.memory_space<vmem>>, vector<8x1xf32>
    tpu.vector_store %arg5[%c0_7, %c0_8], %15 {strides = array<i32>} : memref<8x8xf32, #tpu.memory_space<vmem>>, vector<8x1xf32>,
    %cst_9 = arith.constant 1.000000e+00 : f32
    %17 = vector.broadcast %cst_9 : f32 to vector<1x128xf32>
    %18 = arith.cmpf oeq, %5, %17 : vector<1x128xf32>
    %19 = arith.extui %18 : vector<1x128xi1> to vector<1x128xi32>
    %20 = arith.sitofp %19 : vector<1x128xi32> to vector<1x128xf32>
    %c0_10 = arith.constant 0 : index
    %c1 = arith.constant 1 : index
    %21 = vector.load %arg5[%c0_10, %c1] : memref<8x8xf32, #tpu.memory_space<vmem>>, vector<8x1xf32>
    %22 = vector.broadcast %20 : vector<1x128xf32> to vector<8x128xf32>
    %23 = arith.mulf %3, %22 : vector<8x128xf32>
    %cst_11 = arith.constant dense<0.000000e+00> : vector<8xf32>
    %24 = vector.multi_reduction <add>, %23, %cst_11 [1] : vector<8x128xf32> to vector<8xf32>
    %25 = vector.shape_cast %24 : vector<8xf32> to vector<8x1xf32>
    %26 = arith.addf %21, %25 : vector<8x1xf32>
    %c0_12 = arith.constant 0 : index
    %c1_13 = arith.constant 1 : index
    %27 = vector.load %arg5[%c0_12, %c1_13] : memref<8x8xf32, #tpu.memory_space<vmem>>, vector<8x1xf32>
    tpu.vector_store %arg5[%c0_12, %c1_13], %26 {strides = array<i32>} : memref<8x8xf32, #tpu.memory_space<vmem>>, vector<8x1xf32>,
    %cst_14 = arith.constant 2.000000e+00 : f32
    %28 = vector.broadcast %cst_14 : f32 to vector<1x128xf32>
    %29 = arith.cmpf oeq, %5, %28 : vector<1x128xf32>
    %30 = arith.extui %29 : vector<1x128xi1> to vector<1x128xi32>
    %31 = arith.sitofp %30 : vector<1x128xi32> to vector<1x128xf32>
    %c0_15 = arith.constant 0 : index
    %c2 = arith.constant 2 : index
    %32 = vector.load %arg5[%c0_15, %c2] : memref<8x8xf32, #tpu.memory_space<vmem>>, vector<8x1xf32>
    %33 = vector.broadcast %31 : vector<1x128xf32> to vector<8x128xf32>
    %34 = arith.mulf %3, %33 : vector<8x128xf32>
    %cst_16 = arith.constant dense<0.000000e+00> : vector<8xf32>
    %35 = vector.multi_reduction <add>, %34, %cst_16 [1] : vector<8x128xf32> to vector<8xf32>
    %36 = vector.shape_cast %35 : vector<8xf32> to vector<8x1xf32>
    %37 = arith.addf %32, %36 : vector<8x1xf32>
    %c0_17 = arith.constant 0 : index
    %c2_18 = arith.constant 2 : index
    %38 = vector.load %arg5[%c0_17, %c2_18] : memref<8x8xf32, #tpu.memory_space<vmem>>, vector<8x1xf32>
    tpu.vector_store %arg5[%c0_17, %c2_18], %37 {strides = array<i32>} : memref<8x8xf32, #tpu.memory_space<vmem>>, vector<8x1xf32>,
    %cst_19 = arith.constant 3.000000e+00 : f32
    %39 = vector.broadcast %cst_19 : f32 to vector<1x128xf32>
    %40 = arith.cmpf oeq, %5, %39 : vector<1x128xf32>
    %41 = arith.extui %40 : vector<1x128xi1> to vector<1x128xi32>
    %42 = arith.sitofp %41 : vector<1x128xi32> to vector<1x128xf32>
    %c0_20 = arith.constant 0 : index
    %c3 = arith.constant 3 : index
    %43 = vector.load %arg5[%c0_20, %c3] : memref<8x8xf32, #tpu.memory_space<vmem>>, vector<8x1xf32>
    %44 = vector.broadcast %42 : vector<1x128xf32> to vector<8x128xf32>
    %45 = arith.mulf %3, %44 : vector<8x128xf32>
    %cst_21 = arith.constant dense<0.000000e+00> : vector<8xf32>
    %46 = vector.multi_reduction <add>, %45, %cst_21 [1] : vector<8x128xf32> to vector<8xf32>
    %47 = vector.shape_cast %46 : vector<8xf32> to vector<8x1xf32>
    %48 = arith.addf %43, %47 : vector<8x1xf32>
    %c0_22 = arith.constant 0 : index
    %c3_23 = arith.constant 3 : index
    %49 = vector.load %arg5[%c0_22, %c3_23] : memref<8x8xf32, #tpu.memory_space<vmem>>, vector<8x1xf32>
    tpu.vector_store %arg5[%c0_22, %c3_23], %48 {strides = array<i32>} : memref<8x8xf32, #tpu.memory_space<vmem>>, vector<8x1xf32>,
    %cst_24 = arith.constant 4.000000e+00 : f32
    %50 = vector.broadcast %cst_24 : f32 to vector<1x128xf32>
    %51 = arith.cmpf oeq, %5, %50 : vector<1x128xf32>
    %52 = arith.extui %51 : vector<1x128xi1> to vector<1x128xi32>
    %53 = arith.sitofp %52 : vector<1x128xi32> to vector<1x128xf32>
    %c0_25 = arith.constant 0 : index
    %c4 = arith.constant 4 : index
    %54 = vector.load %arg5[%c0_25, %c4] : memref<8x8xf32, #tpu.memory_space<vmem>>, vector<8x1xf32>
    %55 = vector.broadcast %53 : vector<1x128xf32> to vector<8x128xf32>
    %56 = arith.mulf %3, %55 : vector<8x128xf32>
    %cst_26 = arith.constant dense<0.000000e+00> : vector<8xf32>
    %57 = vector.multi_reduction <add>, %56, %cst_26 [1] : vector<8x128xf32> to vector<8xf32>
    %58 = vector.shape_cast %57 : vector<8xf32> to vector<8x1xf32>
    %59 = arith.addf %54, %58 : vector<8x1xf32>
    %c0_27 = arith.constant 0 : index
    %c4_28 = arith.constant 4 : index
    %60 = vector.load %arg5[%c0_27, %c4_28] : memref<8x8xf32, #tpu.memory_space<vmem>>, vector<8x1xf32>
    tpu.vector_store %arg5[%c0_27, %c4_28], %59 {strides = array<i32>} : memref<8x8xf32, #tpu.memory_space<vmem>>, vector<8x1xf32>,
    %cst_29 = arith.constant 5.000000e+00 : f32
    %61 = vector.broadcast %cst_29 : f32 to vector<1x128xf32>
    %62 = arith.cmpf oeq, %5, %61 : vector<1x128xf32>
    %63 = arith.extui %62 : vector<1x128xi1> to vector<1x128xi32>
    %64 = arith.sitofp %63 : vector<1x128xi32> to vector<1x128xf32>
    %c0_30 = arith.constant 0 : index
    %c5 = arith.constant 5 : index
    %65 = vector.load %arg5[%c0_30, %c5] : memref<8x8xf32, #tpu.memory_space<vmem>>, vector<8x1xf32>
    %66 = vector.broadcast %64 : vector<1x128xf32> to vector<8x128xf32>
    %67 = arith.mulf %3, %66 : vector<8x128xf32>
    %cst_31 = arith.constant dense<0.000000e+00> : vector<8xf32>
    %68 = vector.multi_reduction <add>, %67, %cst_31 [1] : vector<8x128xf32> to vector<8xf32>
    %69 = vector.shape_cast %68 : vector<8xf32> to vector<8x1xf32>
    %70 = arith.addf %65, %69 : vector<8x1xf32>
    %c0_32 = arith.constant 0 : index
    %c5_33 = arith.constant 5 : index
    %71 = vector.load %arg5[%c0_32, %c5_33] : memref<8x8xf32, #tpu.memory_space<vmem>>, vector<8x1xf32>
    tpu.vector_store %arg5[%c0_32, %c5_33], %70 {strides = array<i32>} : memref<8x8xf32, #tpu.memory_space<vmem>>, vector<8x1xf32>,
    %cst_34 = arith.constant 6.000000e+00 : f32
    %72 = vector.broadcast %cst_34 : f32 to vector<1x128xf32>
    %73 = arith.cmpf oeq, %5, %72 : vector<1x128xf32>
    %74 = arith.extui %73 : vector<1x128xi1> to vector<1x128xi32>
    %75 = arith.sitofp %74 : vector<1x128xi32> to vector<1x128xf32>
    %c0_35 = arith.constant 0 : index
    %c6 = arith.constant 6 : index
    %76 = vector.load %arg5[%c0_35, %c6] : memref<8x8xf32, #tpu.memory_space<vmem>>, vector<8x1xf32>
    %77 = vector.broadcast %75 : vector<1x128xf32> to vector<8x128xf32>
    %78 = arith.mulf %3, %77 : vector<8x128xf32>
    %cst_36 = arith.constant dense<0.000000e+00> : vector<8xf32>
    %79 = vector.multi_reduction <add>, %78, %cst_36 [1] : vector<8x128xf32> to vector<8xf32>
    %80 = vector.shape_cast %79 : vector<8xf32> to vector<8x1xf32>
    %81 = arith.addf %76, %80 : vector<8x1xf32>
    %c0_37 = arith.constant 0 : index
    %c6_38 = arith.constant 6 : index
    %82 = vector.load %arg5[%c0_37, %c6_38] : memref<8x8xf32, #tpu.memory_space<vmem>>, vector<8x1xf32>
    tpu.vector_store %arg5[%c0_37, %c6_38], %81 {strides = array<i32>} : memref<8x8xf32, #tpu.memory_space<vmem>>, vector<8x1xf32>,
    %cst_39 = arith.constant 7.000000e+00 : f32
    %83 = vector.broadcast %cst_39 : f32 to vector<1x128xf32>
    %84 = arith.cmpf oeq, %5, %83 : vector<1x128xf32>
    %85 = arith.extui %84 : vector<1x128xi1> to vector<1x128xi32>
    %86 = arith.sitofp %85 : vector<1x128xi32> to vector<1x128xf32>
    %c0_40 = arith.constant 0 : index
    %c7 = arith.constant 7 : index
    %87 = vector.load %arg5[%c0_40, %c7] : memref<8x8xf32, #tpu.memory_space<vmem>>, vector<8x1xf32>
    %88 = vector.broadcast %86 : vector<1x128xf32> to vector<8x128xf32>
    %89 = arith.mulf %3, %88 : vector<8x128xf32>
    %cst_41 = arith.constant dense<0.000000e+00> : vector<8xf32>
    %90 = vector.multi_reduction <add>, %89, %cst_41 [1] : vector<8x128xf32> to vector<8xf32>
    %91 = vector.shape_cast %90 : vector<8xf32> to vector<8x1xf32>
    %92 = arith.addf %87, %91 : vector<8x1xf32>
    %c0_42 = arith.constant 0 : index
    %c7_43 = arith.constant 7 : index
    %93 = vector.load %arg5[%c0_42, %c7_43] : memref<8x8xf32, #tpu.memory_space<vmem>>, vector<8x1xf32>
    tpu.vector_store %arg5[%c0_42, %c7_43], %92 {strides = array<i32>} : memref<8x8xf32, #tpu.memory_space<vmem>>, vector<8x1xf32>,
    %c1_i32 = arith.constant 1 : i32
    %94 = arith.cmpi eq, %arg1, %c1_i32 : i32
    %95 = arith.extui %94 : i1 to i32
    %c0_i32_44 = arith.constant 0 : i32
    %96 = arith.cmpi ne, %95, %c0_i32_44 : i32
    scf.if %96 {
      %c0_45 = arith.constant 0 : index
      %c0_46 = arith.constant 0 : index
      %97 = vector.load %arg5[%c0_45, %c0_46] : memref<8x8xf32, #tpu.memory_space<vmem>>, vector<8x8xf32>
      %c0_47 = arith.constant 0 : index
      %c0_48 = arith.constant 0 : index
      %c0_49 = arith.constant 0 : index
      %98 = vector.load %arg4[%c0_47, %c0_48, %c0_49] : memref<1x8x8xf32, #tpu.memory_space<vmem>>, vector<1x8x8xf32>
      %99 = vector.shape_cast %98 : vector<1x8x8xf32> to vector<8x8xf32>
      %100 = vector.shape_cast %97 : vector<8x8xf32> to vector<1x8x8xf32>
      tpu.vector_store %arg4[%c0_47, %c0_48, %c0_49], %100 {strides = array<i32>} : memref<1x8x8xf32, #tpu.memory_space<vmem>>, vector<1x8x8xf32>,
    } else {
    }
    return
  }
  func.func @transform_0(%arg0: i32, %arg1: i32) -> (i32, i32) {
    %c2_i32 = arith.constant 2 : i32
    %0 = arith.muli %arg0, %c2_i32 : i32
    %1 = arith.addi %0, %arg1 : i32
    %c0_i32 = arith.constant 0 : i32
    %c0_i32_0 = arith.constant 0 : i32
    return %c0_i32, %1 : i32, i32
  }
  func.func @transform_1(%arg0: i32, %arg1: i32) -> (i32, i32) {
    %c2_i32 = arith.constant 2 : i32
    %0 = arith.muli %arg0, %c2_i32 : i32
    %1 = arith.addi %0, %arg1 : i32
    %c0_i32 = arith.constant 0 : i32
    %c0_i32_0 = arith.constant 0 : i32
    return %c0_i32, %1 : i32, i32
  }
  func.func @transform_2(%arg0: i32, %arg1: i32) -> (i32, i32, i32) {
    %c0_i32 = arith.constant 0 : i32
    %c0_i32_0 = arith.constant 0 : i32
    %c0_i32_1 = arith.constant 0 : i32
    return %arg0, %c0_i32, %c0_i32_0 : i32, i32, i32
  }
}

</mosaic_0001>

<llo_original>
// kernel: tpu_custom_call.1
$region0: #{tpu_custom_call.1}
  #allocation0 [shape = 'u32[]', space=smem, size = 0x4, offset = 0x4, fixed_abs, tag = 'smem constant byte address 0x4 - core index']
  #allocation1 [shape = 'u32[72,128]{1,0:T(1,128)}', space=vmem, size = 0x9000, scoped, tag = 'internal scratch']
  #allocation2 [shape = 'f32[8,8]{1,0:T(8,128)}', space=vmem, size = 0x1000, scoped, tag = 'scratch operand']
  %s0 = inlined_call_operand.hbm [shape: f32[8,512], index: 0, kind: input, shape index: {}]
  %s1 = inlined_call_operand.hbm [shape: bf16[1,512], index: 1, kind: input, shape index: {}]
  %s2 = inlined_call_operand.hbm [shape: f32[2,8,8], index: 2, kind: output, shape index: {}]
  %s3 = sld [smem:[#allocation0]]
  $region57: #{tpu_custom_call.1} parent=0
    _
  %s5 = ssub.s32 1, %s3
  %s6 = scalar_select 0, %s5, %s3
  $region1: #{tpu_custom_call.1} parent=0
    #allocation3 [shape = 'u8[8192]{0}', space=vmem, size = 0x2000, scoped, tag = 'input window, operand 0']
    #allocation4 [shape = 's32[2]{0}', space=sflag, size = 0x8, scoped, tag = 'scoped memory for tpu_custom_call.1']
    #allocation5 [shape = 's32[2]{0}', space=sflag, size = 0x8, scoped, tag = 'scoped memory for tpu_custom_call.1']
    #allocation6 [shape = 'u8[1024]{0}', space=vmem, size = 0x400, scoped, tag = 'input window, operand 1']
    #allocation7 [shape = 's32[2]{0}', space=sflag, size = 0x8, scoped, tag = 'scoped memory for tpu_custom_call.1']
    #allocation8 [shape = 'u8[8192]{0}', space=vmem, size = 0x2000, scoped, tag = 'output window, operand 0']
    %7 = vsyncpa [#allocation4], 0
    %s8 = scalar_lea.sflag [#allocation4], 1
    %9 = vsyncpa %s8, 0
    %10 = vsyncpa [#allocation7], 0
    %s11 = scalar_lea.sflag [#allocation7], 1
    %12 = vsyncpa %s11, 0
    %13 = vsyncpa [#allocation5], 0
    %s14 = scalar_lea.sflag [#allocation5], 1
    %15 = vsyncpa %s14, 0
    loop: start=0, step=1, limit=6
    $region2: #{tpu_custom_call.1} parent=1 // loop_pre_header
      _
    $region3: #{tpu_custom_call.1} parent=1 // loop_header
      %s17 = sphi 0, %s21
      %p18 = scmp.ge.s32.totalorder %s17, 6
      %s24 = sphi 0, %s36
      %s25 = sphi 0, %s32
      %s26 = sphi 0, %s24
      %s27 = sphi 0, %s25
      %s28 = sphi 0, %s26
      %s29 = sphi 0, %s27
      %s43 = sphi 0, %s45
      %s46 = sphi 0, %s43
      %s47 = sphi 0, %s46
      %s63 = sphi 0, %s47
      %s73 = sphi 0, %s75
      %s76 = sphi 0, %s73
      %s77 = sphi 0, %s76
      %s93 = sphi 0, %s77
      %s99 = sphi 0, %s101
      %s102 = sphi 0, %s99
      %s103 = sphi 0, %s102
      %s119 = sphi 0, %s103
    $region4: #{tpu_custom_call.1} parent=1 // loop_header_branch
      %20 = sbr.rel (%p18) target = $region8
    $region5: #{tpu_custom_call.1} parent=1 // loop_body
      %s22 = ssub.s32 %s17, 1
      %s23 = ssub.s32 %s17, 2
      %s30 = sadd.s32 1, %s25
      %p31 = scmp.ge.s32.totalorder %s30, 2
      %s32 = scalar_select %p31, 0, %s30
      %s33 = sadd.s32 1, %s24
      %s34 = scalar_select %p31, %s33, %s24
      %p35 = scmp.ge.s32.totalorder %s34, 2
      %s36 = scalar_select %p35, 0, %s34
      %s37 = smul.u32 %s24, 2
      %s38 = sadd.s32 %s37, %s25
      %s39 = smul.u32 %s36, 2
      %s40 = sadd.s32 %s39, %s32
      %s41 = ssub.s32 %s38, %s40
      %p42 = scmp.eq.s32.totalorder %s41, 0
      %s44 = sadd.s32 %s43, 1
      %s45 = scalar_select %p42, %s43, %s44
      %p48 = pneg %p42
      %p49 = scmp.eq.s32.totalorder %s17, 3
      %p50 = por %p48, %p49
      %p51 = scmp.ne.s32.totalorder %s43, %s46
      %p52 = scmp.eq.s32.totalorder %s17, 0
      %p53 = por %p51, %p52
      %p54 = scmp.ne.s32.totalorder %s43, %s46
      %p55 = scmp.eq.s32.totalorder %s22, 3
      %p56 = por %p54, %p55
      %p57 = scmp.ne.s32.totalorder %s46, %s47
      %p58 = scmp.eq.s32.totalorder %s22, 0
      %p59 = por %p57, %p58
      %p60 = scmp.ne.s32.totalorder %s46, %s47
      %p61 = scmp.eq.s32.totalorder %s23, 3
      %p62 = por %p60, %p61
      %p64 = scmp.ne.s32.totalorder %s47, %s63
      %p65 = scmp.eq.s32.totalorder %s23, 0
      %p66 = por %p64, %p65
      %s67 = smul.u32 %s24, 2
      %s68 = sadd.s32 %s67, %s25
      %s69 = smul.u32 %s36, 2
      %s70 = sadd.s32 %s69, %s32
      %s71 = ssub.s32 %s68, %s70
      %p72 = scmp.eq.s32.totalorder %s71, 0
      %s74 = sadd.s32 %s73, 1
      %s75 = scalar_select %p72, %s73, %s74
      %p78 = pneg %p72
      %p79 = scmp.eq.s32.totalorder %s17, 3
      %p80 = por %p78, %p79
      %p81 = scmp.ne.s32.totalorder %s73, %s76
      %p82 = scmp.eq.s32.totalorder %s17, 0
      %p83 = por %p81, %p82
      %p84 = scmp.ne.s32.totalorder %s73, %s76
      %p85 = scmp.eq.s32.totalorder %s22, 3
      %p86 = por %p84, %p85
      %p87 = scmp.ne.s32.totalorder %s76, %s77
      %p88 = scmp.eq.s32.totalorder %s22, 0
      %p89 = por %p87, %p88
      %p90 = scmp.ne.s32.totalorder %s76, %s77
      %p91 = scmp.eq.s32.totalorder %s23, 3
      %p92 = por %p90, %p91
      %p94 = scmp.ne.s32.totalorder %s77, %s93
      %p95 = scmp.eq.s32.totalorder %s23, 0
      %p96 = por %p94, %p95
      %s97 = ssub.s32 %s24, %s36
      %p98 = scmp.eq.s32.totalorder %s97, 0
      %s100 = sadd.s32 %s99, 1
      %s101 = scalar_select %p98, %s99, %s100
      %p104 = pneg %p98
      %p105 = scmp.eq.s32.totalorder %s17, 3
      %p106 = por %p104, %p105
      %p107 = scmp.ne.s32.totalorder %s99, %s102
      %p108 = scmp.eq.s32.totalorder %s17, 0
      %p109 = por %p107, %p108
      %p110 = scmp.ne.s32.totalorder %s99, %s102
      %p111 = scmp.eq.s32.totalorder %s22, 3
      %p112 = por %p110, %p111
      %p113 = scmp.ne.s32.totalorder %s102, %s103
      %p114 = scmp.eq.s32.totalorder %s22, 0
      %p115 = por %p113, %p114
      %p116 = scmp.ne.s32.totalorder %s102, %s103
      %p117 = scmp.eq.s32.totalorder %s23, 3
      %p118 = por %p116, %p117
      %p120 = scmp.ne.s32.totalorder %s103, %s119
      %p121 = scmp.eq.s32.totalorder %s23, 0
      %p122 = por %p120, %p121
      %p123 = scmp.le.s32.totalorder 1, %s17
      %p124 = scmp.lt.s32.totalorder %s17, 5
      %p125 = pnand %p123, %p124
      %p126 = pneg %p125
      // Predicated region
      $region9: #{tpu_custom_call.1} parent=5 // pred_check
        _
      $region10: #{tpu_custom_call.1} parent=5 // pred_check_branch
        %128 = sbr.rel (%p125) target = $region12
      $region11: #{tpu_custom_call.1} parent=5 // pred_region
        %s129 = ssub.s32 %s17, 1
      $region12: #{tpu_custom_call.1} parent=5 // pred_fallthru
        _
      %p130 = scmp.lt.s32.totalorder %s17, 4
      // Predicated region
      $region13: #{tpu_custom_call.1} parent=5 // pred_check
        %p131 = pneg %p130
      $region14: #{tpu_custom_call.1} parent=5 // pred_check_branch
        %133 = sbr.rel (%p131) target = $region16
      $region15: #{tpu_custom_call.1} parent=5 // pred_region
        // Predicated region
        $region17: #{tpu_custom_call.1} parent=15 // pred_check
          %p134 = pneg %p53
        $region18: #{tpu_custom_call.1} parent=15 // pred_check_branch
          %136 = sbr.rel (%p134) target = $region20
        $region19: #{tpu_custom_call.1} parent=15 // pred_region
          %s137 = sand.u32 %s43, 1
          %s138 = scalar_lea.sflag [#allocation4], %s137
          %s139 = sand.u32 %s43, 1
          %s140 = smul.addr %s139, 8
          %s141 = scalar_lea.vmem [#allocation3], %s140
          %s142 = smul.u32 %s24, 2
          %s143 = sadd.s32 %s142, %s25
          %145 = vsyncadd %s138, 0
          %s146 = smul.addr %s143, 8
          %s147 = scalar_lea.hbm %s0, %s146
          %s149 = sshll.u32 %s147, 4
          %s150 = int_to_ptr.hbm [resolvable:$true] %s149
          %s151 = sshll.u32 %s141, 4
          %s152 = int_to_ptr.vmem [resolvable:$true] %s151
          %154 = dma.hbm_to_vmem [thread:$0]  %s150, 128, %s152, %s138
        $region20: #{tpu_custom_call.1} parent=15 // pred_fallthru
          _
        // Predicated region
        $region21: #{tpu_custom_call.1} parent=15 // pred_check
          %p155 = pneg %p83
        $region22: #{tpu_custom_call.1} parent=15 // pred_check_branch
          %157 = sbr.rel (%p155) target = $region24
        $region23: #{tpu_custom_call.1} parent=15 // pred_region
          %s158 = sand.u32 %s73, 1
          %s159 = scalar_lea.sflag [#allocation7], %s158
          %s160 = sand.u32 %s73, 1
          %s161 = scalar_lea.vmem [#allocation6], %s160
          %s162 = smul.u32 %s24, 2
          %s163 = sadd.s32 %s162, %s25
          %165 = vsyncadd %s159, 0
          %s166 = scalar_lea.hbm %s1, %s163
          %s168 = sshll.u32 %s166, 4
          %s169 = int_to_ptr.hbm [resolvable:$true] %s168
          %s170 = sshll.u32 %s161, 4
          %s171 = int_to_ptr.vmem [resolvable:$true] %s170
          %173 = dma.hbm_to_vmem [thread:$0]  %s169, 16, %s171, %s159
        $region24: #{tpu_custom_call.1} parent=15 // pred_fallthru
          _
      $region16: #{tpu_custom_call.1} parent=5 // pred_fallthru
        _
      %p174 = scmp.le.s32.totalorder 1, %s17
      %p175 = scmp.lt.s32.totalorder %s17, 5
      %p176 = pnand %p174, %p175
      %p177 = pneg %p176
      // Predicated region
      $region25: #{tpu_custom_call.1} parent=5 // pred_check
        _
      $region26: #{tpu_custom_call.1} parent=5 // pred_check_branch
        %179 = sbr.rel (%p176) target = $region28
      $region27: #{tpu_custom_call.1} parent=5 // pred_region
        %s180 = ssub.s32 %s17, 1
        %s181 = sand.u32 %s46, 1
        %s182 = scalar_lea.sflag [#allocation4], %s181
        %s183 = sand.u32 %s46, 1
        %s184 = smul.addr %s183, 8
        %s185 = scalar_lea.vmem [#allocation3], %s184
        // Predicated region
        $region29: #{tpu_custom_call.1} parent=27 // pred_check
          %p186 = pneg %p59
        $region30: #{tpu_custom_call.1} parent=27 // pred_check_branch
          %188 = sbr.rel (%p186) target = $region32
        $region31: #{tpu_custom_call.1} parent=27 // pred_region
          %190 = dma.done %s182, 128
        $region32: #{tpu_custom_call.1} parent=27 // pred_fallthru
          _
        %s191 = sand.u32 %s76, 1
        %s192 = scalar_lea.sflag [#allocation7], %s191
        %s193 = sand.u32 %s76, 1
        %s194 = scalar_lea.vmem [#allocation6], %s193
        // Predicated region
        $region33: #{tpu_custom_call.1} parent=27 // pred_check
          %p195 = pneg %p89
        $region34: #{tpu_custom_call.1} parent=27 // pred_check_branch
          %197 = sbr.rel (%p195) target = $region36
        $region35: #{tpu_custom_call.1} parent=27 // pred_region
          %199 = dma.done %s192, 16
        $region36: #{tpu_custom_call.1} parent=27 // pred_fallthru
          _
        %s200 = sand.u32 %s46, 1
        %s201 = scalar_lea.sflag [#allocation4], %s200
        %s202 = sand.u32 %s46, 1
        %s203 = smul.addr %s202, 8
        %s204 = scalar_lea.vmem [#allocation3], %s203
        %p205 = pneg %p59
        %p206 = pneg %p56
        %s207 = sand.u32 %s76, 1
        %s208 = scalar_lea.sflag [#allocation7], %s207
        %s209 = sand.u32 %s76, 1
        %s210 = scalar_lea.vmem [#allocation6], %s209
        %p211 = pneg %p89
        %p212 = pneg %p86
        %p213 = pneg %p115
        %p214 = pneg %p112
        %s215 = sand.u32 %s102, 1
        %s216 = scalar_lea.sflag [#allocation5], %s215
        %s217 = sand.u32 %s102, 1
        %s218 = smul.addr %s217, 8
        %s219 = scalar_lea.vmem [#allocation8], %s218
        %s220 = smul.u32 %s26, 2
        %s221 = sadd.s32 %s220, %s27
        %s222 = smul.u32 %s26, 2
        %s223 = sadd.s32 %s222, %s27
        %p224 = scmp.eq.s32.totalorder %s27, 0
        // Predicated region
        $region37: #{tpu_custom_call.1} parent=27 // pred_check
          %p225 = pneg %p224
        $region38: #{tpu_custom_call.1} parent=27 // pred_check_branch
          %227 = sbr.rel (%p225) target = $region40
        $region39: #{tpu_custom_call.1} parent=27 // pred_region
          %vm228 = vcmask 64512
          %229 = vst.msk [vmem:[#allocation2] sm:$0xff] %vm228, 0.0
        $region40: #{tpu_custom_call.1} parent=27 // pred_fallthru
          _
        %v230 = vld [vmem:[%s185] sm:$0xff]
        %v231 = vld [vmem:[%s194] sm:$0x1]
        %v232 = vunpack.c.l.bf16 %v231
        %vm233 = vcmp.eq.f32.partialorder %v232, 0.0
        %v234 = vsel %vm233, 1, 0
        %v235 = vcvt.s32.f32 %v234
        %v236 = vld [vmem:[#allocation2] sm:$0xff]
        %v237 = vperm.slane %v235, 0
        %v238 = vmul.f32 %v230, %v237
        %239 = vadd.xlane.f32.xlu0 %v238
        %v240 = vpop.xlane.xlu0 %239
        %v241 = vadd.f32 %v236, %v240
        %vm242 = vcmask 7168
        %243 = vst.msk [vmem:[#allocation2] sm:$0xff] %vm242, %v241
        %vm244 = vcmp.eq.f32.partialorder %v232, 1.0
        %v245 = vsel %vm244, 1, 0
        %v246 = vcvt.s32.f32 %v245
        %v247 = vld [vmem:[#allocation2] sm:$0xff]
        %v248 = vperm.slane %v246, 0
        %v249 = vmul.f32 %v230, %v248
        %250 = vadd.xlane.f32.xlu0 %v249
        %v251 = vpop.xlane.xlu0 %250
        %v252 = vadd.f32 %v247, %v251
        %vm253 = vcmask 15368
        %254 = vst.msk [vmem:[#allocation2] sm:$0xff] %vm253, %v252
        %vm255 = vcmp.eq.f32.partialorder %v232, 2.0
        %v256 = vsel %vm255, 1, 0
        %v257 = vcvt.s32.f32 %v256
        %v258 = vld [vmem:[#allocation2] sm:$0xff]
        %v259 = vperm.slane %v257, 0
        %v260 = vmul.f32 %v230, %v259
        %261 = vadd.xlane.f32.xlu0 %v260
        %v262 = vpop.xlane.xlu0 %261
        %v263 = vadd.f32 %v258, %v262
        %vm264 = vcmask 23568
        %265 = vst.msk [vmem:[#allocation2] sm:$0xff] %vm264, %v263
        %vm266 = vcmp.eq.f32.partialorder %v232, 3.0
        %v267 = vsel %vm266, 1, 0
        %v268 = vcvt.s32.f32 %v267
        %v269 = vld [vmem:[#allocation2] sm:$0xff]
        %v270 = vperm.slane %v268, 0
        %v271 = vmul.f32 %v230, %v270
        %272 = vadd.xlane.f32.xlu0 %v271
        %v273 = vpop.xlane.xlu0 %272
        %v274 = vadd.f32 %v269, %v273
        %vm275 = vcmask 31768
        %276 = vst.msk [vmem:[#allocation2] sm:$0xff] %vm275, %v274
        %vm277 = vcmp.eq.f32.partialorder %v232, 4.0
        %v278 = vsel %vm277, 1, 0
        %v279 = vcvt.s32.f32 %v278
        %v280 = vld [vmem:[#allocation2] sm:$0xff]
        %v281 = vperm.slane %v279, 0
        %v282 = vmul.f32 %v230, %v281
        %283 = vadd.xlane.f32.xlu0 %v282
        %v284 = vpop.xlane.xlu0 %283
        %v285 = vadd.f32 %v280, %v284
        %vm286 = vcmask 39968
        %287 = vst.msk [vmem:[#allocation2] sm:$0xff] %vm286, %v285
        %vm288 = vcmp.eq.f32.partialorder %v232, 5.0
        %v289 = vsel %vm288, 1, 0
        %v290 = vcvt.s32.f32 %v289
        %v291 = vld [vmem:[#allocation2] sm:$0xff]
        %v292 = vperm.slane %v290, 0
        %v293 = vmul.f32 %v230, %v292
        %294 = vadd.xlane.f32.xlu0 %v293
        %v295 = vpop.xlane.xlu0 %294
        %v296 = vadd.f32 %v291, %v295
        %vm297 = vcmask 48168
        %298 = vst.msk [vmem:[#allocation2] sm:$0xff] %vm297, %v296
        %vm299 = vcmp.eq.f32.partialorder %v232, 6.0
        %v300 = vsel %vm299, 1, 0
        %v301 = vcvt.s32.f32 %v300
        %v302 = vld [vmem:[#allocation2] sm:$0xff]
        %v303 = vperm.slane %v301, 0
        %v304 = vmul.f32 %v230, %v303
        %305 = vadd.xlane.f32.xlu0 %v304
        %v306 = vpop.xlane.xlu0 %305
        %v307 = vadd.f32 %v302, %v306
        %vm308 = vcmask 56368
        %309 = vst.msk [vmem:[#allocation2] sm:$0xff] %vm308, %v307
        %vm310 = vcmp.eq.f32.partialorder %v232, 7.0
        %v311 = vsel %vm310, 1, 0
        %v312 = vcvt.s32.f32 %v311
        %v313 = vld [vmem:[#allocation2] sm:$0xff]
        %v314 = vperm.slane %v312, 0
        %v315 = vmul.f32 %v230, %v314
        %316 = vadd.xlane.f32.xlu0 %v315
        %v317 = vpop.xlane.xlu0 %316
        %v318 = vadd.f32 %v313, %v317
        %vm319 = vcmask 64568
        %320 = vst.msk [vmem:[#allocation2] sm:$0xff] %vm319, %v318
        %p321 = scmp.eq.s32.totalorder %s27, 1
        // Predicated region
        $region41: #{tpu_custom_call.1} parent=27 // pred_check
          %p322 = pneg %p321
        $region42: #{tpu_custom_call.1} parent=27 // pred_check_branch
          %324 = sbr.rel (%p322) target = $region44
        $region43: #{tpu_custom_call.1} parent=27 // pred_region
          %v325 = vld [vmem:[#allocation2] sm:$0xff]
          %vm326 = vcmask 64512
          %327 = vst.msk [vmem:[%s219] sm:$0xff] %vm326, %v325
        $region44: #{tpu_custom_call.1} parent=27 // pred_fallthru
          _
        %s328 = sand.u32 %s102, 1
        %s329 = scalar_lea.sflag [#allocation5], %s328
        %s330 = sand.u32 %s102, 1
        %s331 = smul.addr %s330, 8
        %s332 = scalar_lea.vmem [#allocation8], %s331
        // Predicated region
        $region45: #{tpu_custom_call.1} parent=27 // pred_check
          %p333 = pneg %p112
        $region46: #{tpu_custom_call.1} parent=27 // pred_check_branch
          %335 = sbr.rel (%p333) target = $region48
        $region47: #{tpu_custom_call.1} parent=27 // pred_region
          %337 = vsyncadd %s329, 0
          %s338 = smul.addr %s26, 8
          %s339 = scalar_lea.hbm %s2, %s338
          %s341 = sshll.u32 %s332, 4
          %s342 = int_to_ptr.vmem [resolvable:$true] %s341
          %s343 = sshll.u32 %s339, 4
          %s344 = int_to_ptr.hbm [resolvable:$true] %s343
          %346 = dma.vmem_to_hbm [thread:$0]  %s342, 128, %s344, %s329
        $region48: #{tpu_custom_call.1} parent=27 // pred_fallthru
          _
      $region28: #{tpu_custom_call.1} parent=5 // pred_fallthru
        _
      %p347 = scmp.le.s32.totalorder 2, %s17
      // Predicated region
      $region49: #{tpu_custom_call.1} parent=5 // pred_check
        %p348 = pneg %p347
      $region50: #{tpu_custom_call.1} parent=5 // pred_check_branch
        %350 = sbr.rel (%p348) target = $region52
      $region51: #{tpu_custom_call.1} parent=5 // pred_region
        %s351 = ssub.s32 %s17, 2
        // Predicated region
        $region53: #{tpu_custom_call.1} parent=51 // pred_check
          %p352 = pneg %p118
        $region54: #{tpu_custom_call.1} parent=51 // pred_check_branch
          %354 = sbr.rel (%p352) target = $region56
        $region55: #{tpu_custom_call.1} parent=51 // pred_region
          %s355 = sand.u32 %s103, 1
          %s356 = scalar_lea.sflag [#allocation5], %s355
          %s357 = sand.u32 %s103, 1
          %s358 = smul.addr %s357, 8
          %s359 = scalar_lea.vmem [#allocation8], %s358
          %361 = dma.done %s356, 128
        $region56: #{tpu_custom_call.1} parent=51 // pred_fallthru
          _
      $region52: #{tpu_custom_call.1} parent=5 // pred_fallthru
        _
    $region6: #{tpu_custom_call.1} parent=1 // loop_footer
      %s21 = sadd.s32 1, %s17
    $region7: #{tpu_custom_call.1} parent=1 // loop_footer_branch
      %16 = sbr.rel target = $region3
    $region8: #{tpu_custom_call.1} parent=1 // loop_exit
      _
    %362 = vsyncpa [#allocation4], 1
    %s363 = scalar_lea.sflag [#allocation4], 1
    %364 = vsyncpa %s363, 1
    %365 = vsyncpa [#allocation7], 1
    %s366 = scalar_lea.sflag [#allocation7], 1
    %367 = vsyncpa %s366, 1
    %368 = vsyncpa [#allocation5], 1
    %s369 = scalar_lea.sflag [#allocation5], 1
    %370 = vsyncpa %s369, 1

</llo_original>
